<compile_context>
chip_gen: v7x
topology: tpu7x:2x2x1
jax: 0.10.0
libtpu: 0.0.40
codegen_flags: <defaults>
</compile_context>

<pallas_src>
import functools

import jax
import jax.numpy as jnp
import numpy as np
from jax.experimental import pallas as pl
from jax.experimental.pallas import tpu as pltpu


def _pooling_kernel(hs_ref, lbl_ref, out_ref, feat_acc, cnt_acc, *, seq_len):
    # hs_ref  : (1, tS, H)  native dtype (f32 or bf16)
    # lbl_ref : (1, tS, 1)  int32
    # out_ref : (1, 3, H)   f32   (pooled features, written in the epilogue)
    # feat_acc: (3, H)      f32 scratch (masked sums, persists across S tiles)
    # cnt_acc : (3, 1)      f32 scratch (masked counts)
    s = pl.program_id(1)
    n_s = pl.num_programs(1)

    @pl.when(s == 0)
    def _init():
        feat_acc[...] = jnp.zeros_like(feat_acc)
        cnt_acc[...] = jnp.zeros_like(cnt_acc)

    hs = hs_ref[0]                      # (tS, H)
    lbl = lbl_ref[0]                    # (tS, 1) int32
    t_s = hs.shape[0]

    # Label-hit masks: (tS, 3) — sequence on sublanes, labels {1,2,3} on lanes.
    lab = jax.lax.broadcasted_iota(jnp.int32, (t_s, 3), 1) + 1
    hit = lbl == lab                    # (tS, 3) bool

    if seq_len % t_s != 0:
        # cdiv tail tile: zero out-of-bounds rows (garbage labels / values).
        pos = s * t_s + jax.lax.broadcasted_iota(jnp.int32, (t_s, 1), 0)
        valid = pos < seq_len           # (tS, 1) bool
        hit = jnp.logical_and(hit, valid)
        hs = jnp.where(valid, hs, jnp.zeros((), hs.dtype))

    masks = hit.astype(hs.dtype)        # (tS, 3)

    # Single pass over hs: contract the sequence axis on the MXU (f32 acc).
    contract = (((0,), (0,)), ((), ()))
    feat_acc[...] += jax.lax.dot_general(
        masks, hs, contract, preferred_element_type=jnp.float32)        # (3, H)
    ones_col = jnp.ones((t_s, 1), dtype=hs.dtype)
    cnt_acc[...] += jax.lax.dot_general(
        masks, ones_col, contract, preferred_element_type=jnp.float32)  # (3, 1)

    @pl.when(s == n_s - 1)
    def _finalize():
        # Exact reciprocal on the tiny (3,1) tensor; lane-broadcast multiply.
        inv = 1.0 / (cnt_acc[...] + 1e-07)                  # (3, 1)
        out_ref[0] = (feat_acc[...] * inv).astype(out_ref.dtype)


def _choose_seq_tile(S, H, itemsize, max_ts=2048, buf_bytes=4 << 20):
    """Largest multiple-of-8 tile within max_ts and a per-buffer VMEM budget
    (the pipeline double-buffers it); returns S itself if S already fits."""
    cap = max(8, (buf_bytes // max(1, H * itemsize)) // 8 * 8)
    t = min(max_ts, cap)
    if S <= t:
        return S
    return t


def cls_classifier_forward(hidden_states, tok_lbl, w1_t, b1, w2_t, b2, *,
                           max_ts=2048):
    """hidden_states: (B, S, H) (f32 or bf16, streamed in native dtype);
    tok_lbl: (B, S) int; w1_t: (3H, H) = pre_cls.weight.T; b1: (H,);
    w2_t: (H, L) = cls.weight.T; b2: (L,)."""
    B, S, H = hidden_states.shape
    t_s = _choose_seq_tile(S, H, hidden_states.dtype.itemsize, max_ts=max_ts)
    n_s = pl.cdiv(S, t_s)

    lbl3 = tok_lbl.reshape(B, S, 1).astype(jnp.int32)
    kernel = functools.partial(_pooling_kernel, seq_len=S)

    pooled = pl.pallas_call(
        kernel,
        out_shape=jax.ShapeDtypeStruct((B, 3, H), jnp.float32),
        grid_spec=pltpu.PrefetchScalarGridSpec(
            num_scalar_prefetch=0,
            grid=(B, n_s),
            in_specs=[
                pl.BlockSpec((1, t_s, H), lambda b, s: (b, s, 0)),  # hidden_states
                pl.BlockSpec((1, t_s, 1), lambda b, s: (b, s, 0)),  # tok_lbl
            ],
            out_specs=pl.BlockSpec((1, 3, H), lambda b, s: (b, 0, 0)),
            scratch_shapes=[
                pltpu.VMEM((3, H), jnp.float32),    # masked sums accumulator
                pltpu.VMEM((3, 1), jnp.float32),    # masked counts accumulator
            ],
        ),
        compiler_params=pltpu.CompilerParams(
            dimension_semantics=("parallel", "arbitrary")),
    )(hidden_states, lbl3)

    # pre_cls (3H -> H) and cls (H -> L) hoisted out of the kernel: plain
    # B-row XLA matmuls fill the MXU and keep the weights out of VMEM.
    cls_emb = pooled.reshape(B, 3 * H)                       # [inf | perc | back]
    h = cls_emb @ w1_t.astype(jnp.float32) + b1.astype(jnp.float32)
    # dropout is identity at inference time.
    # TODO(synk): training-time dropout would need an RNG mask applied to h.
    out = h @ w2_t.astype(jnp.float32) + b2.astype(jnp.float32)
    return out


def _reference(hidden_states, tok_lbl, w1_t, b1, w2_t, b2):
    hs = hidden_states.astype(jnp.float32)
    feats = []
    for i in (1, 2, 3):
        m = (tok_lbl == i).astype(jnp.float32)
        denom = jnp.sum(m, axis=-1, keepdims=True) + 1e-07
        feats.append(jnp.sum(hs * m[:, :, None], axis=1) / denom)
    cls_emb = jnp.concatenate(feats, axis=1)
    h = cls_emb @ w1_t + b1
    return h @ w2_t + b2


if __name__ == "__main__":
    key = jax.random.PRNGKey(0)
    B, S, H, L = 2, 8, 32, 5

    k_hs, k_lbl, k_w1, k_b1, k_w2, k_b2 = jax.random.split(key, 6)
    hidden_states = jax.random.normal(k_hs, (B, S, H), dtype=jnp.float32)
    tok_lbl = jax.random.randint(k_lbl, (B, S), minval=0, maxval=4,
                                 dtype=jnp.int32)

    # Deterministic "module parameters" (torch Linear: weight (out, in), bias (out,)).
    w1 = jax.random.normal(k_w1, (H, 3 * H), dtype=jnp.float32) * 0.02   # pre_cls.weight
    b1 = jax.random.normal(k_b1, (H,), dtype=jnp.float32) * 0.02         # pre_cls.bias
    w2 = jax.random.normal(k_w2, (L, H), dtype=jnp.float32) * 0.02       # cls.weight
    b2 = jax.random.normal(k_b2, (L,), dtype=jnp.float32) * 0.02         # cls.bias

    # Test 1: single-tile path.
    out = cls_classifier_forward(hidden_states, tok_lbl, w1.T, b1, w2.T, b2)
    out = jax.block_until_ready(out)
    ref = _reference(hidden_states, tok_lbl, w1.T, b1, w2.T, b2)
    np.testing.assert_allclose(np.asarray(out), np.asarray(ref),
                               rtol=1e-4, atol=1e-4)

    # Test 2: multi-tile streaming with a ragged tail (S not divisible by tile).
    S2 = 20
    k_hs2, k_lbl2 = jax.random.split(jax.random.PRNGKey(1), 2)
    hs2 = jax.random.normal(k_hs2, (B, S2, H), dtype=jnp.float32)
    lbl2 = jax.random.randint(k_lbl2, (B, S2), minval=0, maxval=4,
                              dtype=jnp.int32)
    out2 = jax.block_until_ready(
        cls_classifier_forward(hs2, lbl2, w1.T, b1, w2.T, b2, max_ts=8))
    ref2 = _reference(hs2, lbl2, w1.T, b1, w2.T, b2)
    np.testing.assert_allclose(np.asarray(out2), np.asarray(ref2),
                               rtol=1e-4, atol=1e-4)

    print("KERNEL_OK")
</pallas_src>

<mosaic_0001>
module attributes {stable_mosaic.version = 11 : i64} {
  func.func @_pooling_kernel(%arg0: i32, %arg1: i32, %arg2: memref<1x8x32xf32, #tpu.memory_space<vmem>>, %arg3: memref<1x8x1xi32, #tpu.memory_space<vmem>>, %arg4: memref<1x3x32xf32, #tpu.memory_space<vmem>>, %arg5: memref<3x32xf32, #tpu.memory_space<vmem>>, %arg6: memref<3x1xf32, #tpu.memory_space<vmem>>) attributes {dimension_semantics = [#tpu.dimension_semantics<parallel>, #tpu.dimension_semantics<arbitrary>], iteration_bounds = array<i64: 2, 1>, scalar_prefetch = 0 : i64, scratch_operands = 2 : i64, tpu.core_type = #tpu.core_type<tc>, window_params = [{transform_indices = @transform_0, window_bounds = array<i64: 1, 8, 32>}, {transform_indices = @transform_1, window_bounds = array<i64: 1, 8, 1>}, {transform_indices = @transform_2, window_bounds = array<i64: 1, 3, 32>}]} {
    %c0_i32 = arith.constant 0 : i32
    %0 = arith.cmpi eq, %arg1, %c0_i32 : i32
    %1 = arith.extui %0 : i1 to i32
    %c0_i32_0 = arith.constant 0 : i32
    %2 = arith.cmpi ne, %1, %c0_i32_0 : i32
    scf.if %2 {
      %cst_18 = arith.constant 0.000000e+00 : f32
      %26 = vector.broadcast %cst_18 : f32 to vector<3x32xf32>
      %c0_19 = arith.constant 0 : index
      %c0_20 = arith.constant 0 : index
      %27 = vector.load %arg5[%c0_19, %c0_20] : memref<3x32xf32, #tpu.memory_space<vmem>>, vector<3x32xf32>
      tpu.vector_store %arg5[%c0_19, %c0_20], %26 {strides = array<i32>} : memref<3x32xf32, #tpu.memory_space<vmem>>, vector<3x32xf32>,
      %cst_21 = arith.constant 0.000000e+00 : f32
      %28 = vector.broadcast %cst_21 : f32 to vector<3x1xf32>
      %c0_22 = arith.constant 0 : index
      %c0_23 = arith.constant 0 : index
      %29 = vector.load %arg6[%c0_22, %c0_23] : memref<3x1xf32, #tpu.memory_space<vmem>>, vector<3x1xf32>
      tpu.vector_store %arg6[%c0_22, %c0_23], %28 {strides = array<i32>} : memref<3x1xf32, #tpu.memory_space<vmem>>, vector<3x1xf32>,
    } else {
    }
    %c0 = arith.constant 0 : index
    %c0_1 = arith.constant 0 : index
    %c0_2 = arith.constant 0 : index
    %3 = vector.load %arg2[%c0, %c0_1, %c0_2] : memref<1x8x32xf32, #tpu.memory_space<vmem>>, vector<1x8x32xf32>
    %4 = vector.shape_cast %3 : vector<1x8x32xf32> to vector<8x32xf32>
    %c0_3 = arith.constant 0 : index
    %c0_4 = arith.constant 0 : index
    %c0_5 = arith.constant 0 : index
    %5 = vector.load %arg3[%c0_3, %c0_4, %c0_5] : memref<1x8x1xi32, #tpu.memory_space<vmem>>, vector<1x8x1xi32>
    %6 = vector.shape_cast %5 : vector<1x8x1xi32> to vector<8x1xi32>
    %7 = tpu.iota {dimensions = array<i32: 1>} : vector<8x3xi32>
    %c1_i32 = arith.constant 1 : i32
    %8 = vector.broadcast %c1_i32 : i32 to vector<8x3xi32>
    %9 = arith.addi %7, %8 : vector<8x3xi32>
    %10 = vector.broadcast %6 : vector<8x1xi32> to vector<8x3xi32>
    %11 = arith.cmpi eq, %10, %9 : vector<8x3xi32>
    %12 = arith.extui %11 : vector<8x3xi1> to vector<8x3xi32>
    %13 = arith.sitofp %12 : vector<8x3xi32> to vector<8x3xf32>
    %c0_6 = arith.constant 0 : index
    %c0_7 = arith.constant 0 : index
    %14 = vector.load %arg5[%c0_6, %c0_7] : memref<3x32xf32, #tpu.memory_space<vmem>>, vector<3x32xf32>
    %cst = arith.constant dense<0.000000e+00> : vector<3x32xf32>
    %15 = tpu.matmul %13, %4, %cst {dimension_numbers = #tpu.dot_dimension_numbers<[0], [0], [1], [1], [0, 1, 1, 1], [], []>} : vector<8x3xf32>, vector<8x32xf32>, vector<3x32xf32> -> vector<3x32xf32>
    %16 = arith.addf %14, %15 : vector<3x32xf32>
    %c0_8 = arith.constant 0 : index
    %c0_9 = arith.constant 0 : index
    %17 = vector.load %arg5[%c0_8, %c0_9] : memref<3x32xf32, #tpu.memory_space<vmem>>, vector<3x32xf32>
    tpu.vector_store %arg5[%c0_8, %c0_9], %16 {strides = array<i32>} : memref<3x32xf32, #tpu.memory_space<vmem>>, vector<3x32xf32>,
    %cst_10 = arith.constant 1.000000e+00 : f32
    %18 = vector.broadcast %cst_10 : f32 to vector<8x1xf32>
    %c0_11 = arith.constant 0 : index
    %c0_12 = arith.constant 0 : index
    %19 = vector.load %arg6[%c0_11, %c0_12] : memref<3x1xf32, #tpu.memory_space<vmem>>, vector<3x1xf32>
    %cst_13 = arith.constant dense<0.000000e+00> : vector<3x1xf32>
    %20 = tpu.matmul %13, %18, %cst_13 {dimension_numbers = #tpu.dot_dimension_numbers<[0], [0], [1], [1], [0, 1, 1, 1], [], []>} : vector<8x3xf32>, vector<8x1xf32>, vector<3x1xf32> -> vector<3x1xf32>
    %21 = arith.addf %19, %20 : vector<3x1xf32>
    %c0_14 = arith.constant 0 : index
    %c0_15 = arith.constant 0 : index
    %22 = vector.load %arg6[%c0_14, %c0_15] : memref<3x1xf32, #tpu.memory_space<vmem>>, vector<3x1xf32>
    tpu.vector_store %arg6[%c0_14, %c0_15], %21 {strides = array<i32>} : memref<3x1xf32, #tpu.memory_space<vmem>>, vector<3x1xf32>,
    %c0_i32_16 = arith.constant 0 : i32
    %23 = arith.cmpi eq, %arg1, %c0_i32_16 : i32
    %24 = arith.extui %23 : i1 to i32
    %c0_i32_17 = arith.constant 0 : i32
    %25 = arith.cmpi ne, %24, %c0_i32_17 : i32
    scf.if %25 {
      %c0_18 = arith.constant 0 : index
      %c0_19 = arith.constant 0 : index
      %26 = vector.load %arg6[%c0_18, %c0_19] : memref<3x1xf32, #tpu.memory_space<vmem>>, vector<3x1xf32>
      %cst_20 = arith.constant 1.000000e-07 : f32
      %27 = vector.broadcast %cst_20 : f32 to vector<3x1xf32>
      %28 = arith.addf %26, %27 : vector<3x1xf32>
      %cst_21 = arith.constant 1.000000e+00 : f32
      %29 = vector.broadcast %cst_21 : f32 to vector<3x1xf32>
      %30 = arith.divf %29, %28 : vector<3x1xf32>
      %c0_22 = arith.constant 0 : index
      %c0_23 = arith.constant 0 : index
      %31 = vector.load %arg5[%c0_22, %c0_23] : memref<3x32xf32, #tpu.memory_space<vmem>>, vector<3x32xf32>
      %32 = vector.broadcast %30 : vector<3x1xf32> to vector<3x32xf32>
      %33 = arith.mulf %31, %32 : vector<3x32xf32>
      %c0_24 = arith.constant 0 : index
      %c0_25 = arith.constant 0 : index
      %c0_26 = arith.constant 0 : index
      %34 = vector.load %arg4[%c0_24, %c0_25, %c0_26] : memref<1x3x32xf32, #tpu.memory_space<vmem>>, vector<1x3x32xf32>
      %35 = vector.shape_cast %34 : vector<1x3x32xf32> to vector<3x32xf32>
      %36 = vector.shape_cast %33 : vector<3x32xf32> to vector<1x3x32xf32>
      tpu.vector_store %arg4[%c0_24, %c0_25, %c0_26], %36 {strides = array<i32>} : memref<1x3x32xf32, #tpu.memory_space<vmem>>, vector<1x3x32xf32>,
    } else {
    }
    return
  }
  func.func @transform_0(%arg0: i32, %arg1: i32) -> (i32, i32, i32) {
    %c0_i32 = arith.constant 0 : i32
    %c0_i32_0 = arith.constant 0 : i32
    return %arg0, %arg1, %c0_i32 : i32, i32, i32
  }
  func.func @transform_1(%arg0: i32, %arg1: i32) -> (i32, i32, i32) {
    %c0_i32 = arith.constant 0 : i32
    %c0_i32_0 = arith.constant 0 : i32
    return %arg0, %arg1, %c0_i32 : i32, i32, i32
  }
  func.func @transform_2(%arg0: i32, %arg1: i32) -> (i32, i32, i32) {
    %c0_i32 = arith.constant 0 : i32
    %c0_i32_0 = arith.constant 0 : i32
    %c0_i32_1 = arith.constant 0 : i32
    return %arg0, %c0_i32, %c0_i32_0 : i32, i32, i32
  }
}

</mosaic_0001>

<llo_original>
// kernel: tpu_custom_call.1
$region0: #{tpu_custom_call.1}
  #allocation0 [shape = 'u32[]', space=smem, size = 0x4, offset = 0x4, fixed_abs, tag = 'smem constant byte address 0x4 - core index']
  #allocation1 [shape = 'u32[144,128]{1,0:T(1,128)}', space=vmem, size = 0x12000, scoped, tag = 'internal scratch']
  #allocation2 [shape = 'f32[3,32]{1,0:T(4,128)}', space=vmem, size = 0x800, scoped, tag = 'scratch operand']
  #allocation3 [shape = 'f32[3,1]{1,0:T(4,128)}', space=vmem, size = 0x800, scoped, tag = 'scratch operand']
  %s0 = inlined_call_operand.vmem [shape: f32[2,8,32], index: 0, kind: input, shape index: {}]
  %s1 = inlined_call_operand.vmem [shape: s32[2,8,1], index: 1, kind: input, shape index: {}]
  %s2 = inlined_call_operand.vmem [shape: f32[2,3,32], index: 2, kind: output, shape index: {}]
  %s3 = sld [smem:[#allocation0]]
  $region49: #{tpu_custom_call.1} parent=0
    _
  %s5 = ssub.s32 1, %s3
  %s6 = scalar_select 0, %s5, %s3
  loop: start=0, step=1, limit=4
  $region2: #{tpu_custom_call.1} parent=0 // loop_pre_header
    _
  $region3: #{tpu_custom_call.1} parent=0 // loop_header
    %s8 = sphi 0, %s12
    %p9 = scmp.ge.s32.totalorder %s8, 4
    %s15 = sphi 0, %s27
    %s16 = sphi 0, %s23
    %s17 = sphi 0, %s15
    %s18 = sphi 0, %s16
    %s19 = sphi 0, %s17
    %s20 = sphi 0, %s18
    %s32 = sphi 0, %s34
    %s35 = sphi 0, %s32
    %s36 = sphi 0, %s35
    %s52 = sphi 0, %s36
    %s60 = sphi 0, %s62
    %s63 = sphi 0, %s60
    %s64 = sphi 0, %s63
    %s80 = sphi 0, %s64
    %s86 = sphi 0, %s88
    %s89 = sphi 0, %s86
    %s90 = sphi 0, %s89
    %s106 = sphi 0, %s90
  $region4: #{tpu_custom_call.1} parent=0 // loop_header_branch
    %11 = sbr.rel (%p9) target = $region8
  $region5: #{tpu_custom_call.1} parent=0 // loop_body
    %s13 = ssub.s32 %s8, 1
    %s14 = ssub.s32 %s8, 2
    %s21 = sadd.s32 1, %s16
    %p22 = scmp.ge.s32.totalorder %s21, 1
    %s23 = scalar_select %p22, 0, %s21
    %s24 = sadd.s32 1, %s15
    %s25 = scalar_select %p22, %s24, %s15
    %p26 = scmp.ge.s32.totalorder %s25, 2
    %s27 = scalar_select %p26, 0, %s25
    %s28 = ssub.s32 %s15, %s27
    %s29 = ssub.s32 %s16, %s23
    %s30 = sor.u32 %s28, %s29
    %p31 = scmp.eq.s32.totalorder %s30, 0
    %s33 = sadd.s32 %s32, 1
    %s34 = scalar_select %p31, %s32, %s33
    %p37 = pneg %p31
    %p38 = scmp.eq.s32.totalorder %s8, 1
    %p39 = por %p37, %p38
    %p40 = scmp.ne.s32.totalorder %s32, %s35
    %p41 = scmp.eq.s32.totalorder %s8, 0
    %p42 = por %p40, %p41
    %p43 = scmp.ne.s32.totalorder %s32, %s35
    %p44 = scmp.eq.s32.totalorder %s13, 1
    %p45 = por %p43, %p44
    %p46 = scmp.ne.s32.totalorder %s35, %s36
    %p47 = scmp.eq.s32.totalorder %s13, 0
    %p48 = por %p46, %p47
    %p49 = scmp.ne.s32.totalorder %s35, %s36
    %p50 = scmp.eq.s32.totalorder %s14, 1
    %p51 = por %p49, %p50
    %p53 = scmp.ne.s32.totalorder %s36, %s52
    %p54 = scmp.eq.s32.totalorder %s14, 0
    %p55 = por %p53, %p54
    %s56 = ssub.s32 %s15, %s27
    %s57 = ssub.s32 %s16, %s23
    %s58 = sor.u32 %s56, %s57
    %p59 = scmp.eq.s32.totalorder %s58, 0
    %s61 = sadd.s32 %s60, 1
    %s62 = scalar_select %p59, %s60, %s61
    %p65 = pneg %p59
    %p66 = scmp.eq.s32.totalorder %s8, 1
    %p67 = por %p65, %p66
    %p68 = scmp.ne.s32.totalorder %s60, %s63
    %p69 = scmp.eq.s32.totalorder %s8, 0
    %p70 = por %p68, %p69
    %p71 = scmp.ne.s32.totalorder %s60, %s63
    %p72 = scmp.eq.s32.totalorder %s13, 1
    %p73 = por %p71, %p72
    %p74 = scmp.ne.s32.totalorder %s63, %s64
    %p75 = scmp.eq.s32.totalorder %s13, 0
    %p76 = por %p74, %p75
    %p77 = scmp.ne.s32.totalorder %s63, %s64
    %p78 = scmp.eq.s32.totalorder %s14, 1
    %p79 = por %p77, %p78
    %p81 = scmp.ne.s32.totalorder %s64, %s80
    %p82 = scmp.eq.s32.totalorder %s14, 0
    %p83 = por %p81, %p82
    %s84 = ssub.s32 %s15, %s27
    %p85 = scmp.eq.s32.totalorder %s84, 0
    %s87 = sadd.s32 %s86, 1
    %s88 = scalar_select %p85, %s86, %s87
    %p91 = pneg %p85
    %p92 = scmp.eq.s32.totalorder %s8, 1
    %p93 = por %p91, %p92
    %p94 = scmp.ne.s32.totalorder %s86, %s89
    %p95 = scmp.eq.s32.totalorder %s8, 0
    %p96 = por %p94, %p95
    %p97 = scmp.ne.s32.totalorder %s86, %s89
    %p98 = scmp.eq.s32.totalorder %s13, 1
    %p99 = por %p97, %p98
    %p100 = scmp.ne.s32.totalorder %s89, %s90
    %p101 = scmp.eq.s32.totalorder %s13, 0
    %p102 = por %p100, %p101
    %p103 = scmp.ne.s32.totalorder %s89, %s90
    %p104 = scmp.eq.s32.totalorder %s14, 1
    %p105 = por %p103, %p104
    %p107 = scmp.ne.s32.totalorder %s90, %s106
    %p108 = scmp.eq.s32.totalorder %s14, 0
    %p109 = por %p107, %p108
    %p110 = scmp.le.s32.totalorder 1, %s8
    %p111 = scmp.lt.s32.totalorder %s8, 3
    %p112 = pnand %p110, %p111
    %p113 = pneg %p112
    // Predicated region
    $region9: #{tpu_custom_call.1} parent=5 // pred_check
      _
    $region10: #{tpu_custom_call.1} parent=5 // pred_check_branch
      %115 = sbr.rel (%p112) target = $region12
    $region11: #{tpu_custom_call.1} parent=5 // pred_region
      %s116 = ssub.s32 %s8, 1
    $region12: #{tpu_custom_call.1} parent=5 // pred_fallthru
      _
    %p117 = scmp.lt.s32.totalorder %s8, 2
    // Predicated region
    $region13: #{tpu_custom_call.1} parent=5 // pred_check
      %p118 = pneg %p117
    $region14: #{tpu_custom_call.1} parent=5 // pred_check_branch
      %120 = sbr.rel (%p118) target = $region16
    $region15: #{tpu_custom_call.1} parent=5 // pred_region
      // Predicated region
      $region17: #{tpu_custom_call.1} parent=15 // pred_check
        %p121 = pneg %p42
      $region18: #{tpu_custom_call.1} parent=15 // pred_check_branch
        %123 = sbr.rel (%p121) target = $region20
      $region19: #{tpu_custom_call.1} parent=15 // pred_region
        %p124 = scmp.lt.s32.totalorder %s15, 1
        %s125 = scalar_select %p124, %s15, 1
        %p126 = scmp.lt.s32.totalorder %s16, 0
        %s127 = scalar_select %p126, %s16, 0
        %s128 = sadd.s32 %s127, %s125
        %s129 = smul.addr %s128, 8
        %s130 = scalar_lea.vmem %s0, %s129
      $region20: #{tpu_custom_call.1} parent=15 // pred_fallthru
        _
      // Predicated region
      $region21: #{tpu_custom_call.1} parent=15 // pred_check
        %p131 = pneg %p70
      $region22: #{tpu_custom_call.1} parent=15 // pred_check_branch
        %133 = sbr.rel (%p131) target = $region24
      $region23: #{tpu_custom_call.1} parent=15 // pred_region
        %p134 = scmp.lt.s32.totalorder %s15, 1
        %s135 = scalar_select %p134, %s15, 1
        %p136 = scmp.lt.s32.totalorder %s16, 0
        %s137 = scalar_select %p136, %s16, 0
        %s138 = sadd.s32 %s137, %s135
        %s139 = smul.addr %s138, 8
        %s140 = scalar_lea.vmem %s1, %s139
      $region24: #{tpu_custom_call.1} parent=15 // pred_fallthru
        _
    $region16: #{tpu_custom_call.1} parent=5 // pred_fallthru
      _
    %p141 = scmp.le.s32.totalorder 1, %s8
    %p142 = scmp.lt.s32.totalorder %s8, 3
    %p143 = pnand %p141, %p142
    %p144 = pneg %p143
    // Predicated region
    $region25: #{tpu_custom_call.1} parent=5 // pred_check
      _
    $region26: #{tpu_custom_call.1} parent=5 // pred_check_branch
      %146 = sbr.rel (%p143) target = $region28
    $region27: #{tpu_custom_call.1} parent=5 // pred_region
      %s147 = ssub.s32 %s8, 1
      %p148 = scmp.lt.s32.totalorder %s17, 1
      %s149 = scalar_select %p148, %s17, 1
      %p150 = scmp.lt.s32.totalorder %s18, 0
      %s151 = scalar_select %p150, %s18, 0
      %s152 = sadd.s32 %s151, %s149
      %s153 = smul.addr %s152, 8
      %s154 = scalar_lea.vmem %s0, %s153
      %p155 = pneg %p48
      %p156 = pneg %p45
      %p157 = scmp.lt.s32.totalorder %s17, 1
      %s158 = scalar_select %p157, %s17, 1
      %p159 = scmp.lt.s32.totalorder %s18, 0
      %s160 = scalar_select %p159, %s18, 0
      %s161 = sadd.s32 %s160, %s158
      %s162 = smul.addr %s161, 8
      %s163 = scalar_lea.vmem %s1, %s162
      %p164 = pneg %p76
      %p165 = pneg %p73
      %p166 = pneg %p102
      %p167 = pneg %p99
      %p168 = scmp.lt.s32.totalorder %s17, 1
      %s169 = scalar_select %p168, %s17, 1
      %s170 = smul.addr %s169, 4
      %s171 = scalar_lea.vmem %s2, %s170
      %p172 = scmp.lt.s32.totalorder %s17, 1
      %s173 = scalar_select %p172, %s17, 1
      %p174 = scmp.lt.s32.totalorder %s18, 0
      %s175 = scalar_select %p174, %s18, 0
      %s176 = sadd.s32 %s175, %s173
      %s177 = smul.addr %s176, 8
      %s178 = scalar_lea.vmem %s0, %s177
      %p179 = scmp.lt.s32.totalorder %s17, 1
      %s180 = scalar_select %p179, %s17, 1
      %p181 = scmp.lt.s32.totalorder %s18, 0
      %s182 = scalar_select %p181, %s18, 0
      %s183 = sadd.s32 %s182, %s180
      %s184 = smul.addr %s183, 8
      %s185 = scalar_lea.vmem %s1, %s184
      %p186 = scmp.lt.s32.totalorder %s17, 1
      %s187 = scalar_select %p186, %s17, 1
      %s188 = smul.addr %s187, 4
      %s189 = scalar_lea.vmem %s2, %s188
      %p190 = scmp.eq.s32.totalorder %s18, 0
      // Predicated region
      $region29: #{tpu_custom_call.1} parent=27 // pred_check
        %p191 = pneg %p190
      $region30: #{tpu_custom_call.1} parent=27 // pred_check_branch
        %193 = sbr.rel (%p191) target = $region32
      $region31: #{tpu_custom_call.1} parent=27 // pred_region
        %vm194 = vcmask 256000
        %195 = vst.msk [vmem:[#allocation2] sm:$0x7] %vm194, 0.0
        %vm196 = vcmask 2048
        %197 = vst.msk [vmem:[#allocation3] sm:$0x7] %vm196, 0.0
      $region32: #{tpu_custom_call.1} parent=27 // pred_fallthru
        _
      %v198 = vld [vmem:[%s178] sm:$0xff]
      %v199 = vld [vmem:[%s185] sm:$0xff]
      %v200 = vlaneseq
      %v201 = vand.u32 %v200, 127
      %v202 = vadd.s32 %v201, 1
      %203 = vset.pattern.permute.xlu0 0
      %204 = vperm.xlu0 %203, %v199
      %v205 = vpop.permute.xlu0 %204
      %vm206 = vcmp.eq.s32.totalorder %v205, %v202
      %v207 = vsel %vm206, 1, 0
      %v208 = vcvt.s32.f32 %v207
      %v209 = vld [vmem:[#allocation2] sm:$0x7]
      %210 = vxpose.xlu0.b32.start [1/16] %v208, 128
      %211 = vxpose.xlu0.b32.cont [2/16] 0.0, 128
      %212 = vxpose.xlu0.b32.cont [3/16] 0.0, 128
      %213 = vxpose.xlu0.b32.cont [4/16] 0.0, 128
      %214 = vxpose.xlu0.b32.cont [5/16] 0.0, 128
      %215 = vxpose.xlu0.b32.cont [6/16] 0.0, 128
      %216 = vxpose.xlu0.b32.cont [7/16] 0.0, 128
      %217 = vxpose.xlu0.b32.cont [8/16] 0.0, 128
      %218 = vxpose.xlu0.b32.cont [9/16] 0.0, 128
      %219 = vxpose.xlu0.b32.cont [10/16] 0.0, 128
      %220 = vxpose.xlu0.b32.cont [11/16] 0.0, 128
      %221 = vxpose.xlu0.b32.cont [12/16] 0.0, 128
      %222 = vxpose.xlu0.b32.cont [13/16] 0.0, 128
      %223 = vxpose.xlu0.b32.cont [14/16] 0.0, 128
      %224 = vxpose.xlu0.b32.cont [15/16] 0.0, 128
      %225 = vxpose.xlu0.b32.end [16/16] 0.0, 128
      %v226 = vpop.trf.xlu0
      %v227 = vpop.trf.xlu0
      %v228 = vpop.trf.xlu0
      %v229 = vpop.trf.xlu0
      %v230 = vpop.trf.xlu0
      %v231 = vpop.trf.xlu0
      %v232 = vpop.trf.xlu0
      %v233 = vpop.trf.xlu0
      %v234 = vpop.trf.xlu0
      %v235 = vpop.trf.xlu0
      %v236 = vpop.trf.xlu0
      %v237 = vpop.trf.xlu0
      %v238 = vpop.trf.xlu0
      %v239 = vpop.trf.xlu0
      %v240 = vpop.trf.xlu0
      %v241 = vpop.trf.xlu0
      %vm242 = vcmask 64512
      %v244 = vsel %vm242, %v226, 0
      %246 = vmatprep.subr.mxu0 0.0
      %247 = vmatpush1.msra.mxu0 %v198
      %248 = vmatprep.subr.mxu0 0.0
      %249 = vmatpush1.msra.mxu0 0.0
      %250 = vmatprep.subr.mxu0 0.0
      %251 = vmatpush1.msra.mxu0 0.0
      %252 = vmatprep.subr.mxu0 0.0
      %253 = vmatpush1.msra.mxu0 0.0
      %254 = vmatprep.subr.mxu0 0.0
      %255 = vmatpush1.msra.mxu0 0.0
      %256 = vmatprep.subr.mxu0 0.0
      %257 = vmatpush1.msra.mxu0 0.0
      %258 = vmatprep.subr.mxu0 0.0
      %259 = vmatpush1.msra.mxu0 0.0
      %260 = vmatprep.subr.mxu0 0.0
      %261 = vmatpush1.msra.mxu0 0.0
      %262 = vmatprep.subr.mxu0 0.0
      %263 = vmatpush1.msra.mxu0 0.0
      %264 = vmatprep.subr.mxu0 0.0
      %265 = vmatpush1.msra.mxu0 0.0
      %266 = vmatprep.subr.mxu0 0.0
      %267 = vmatpush1.msra.mxu0 0.0
      %268 = vmatprep.subr.mxu0 0.0
      %269 = vmatpush1.msra.mxu0 0.0
      %270 = vmatprep.subr.mxu0 0.0
      %271 = vmatpush1.msra.mxu0 0.0
      %272 = vmatprep.subr.mxu0 0.0
      %273 = vmatpush1.msra.mxu0 0.0
      %274 = vmatprep.subr.mxu0 0.0
      %275 = vmatpush1.msra.mxu0 0.0
      %276 = vmatprep.subr.mxu0 0.0
      %277 = vmatpush1.msra.mxu0 0.0
      %278 = vmatprep.subr.mxu0 0.0
      %279 = vmatpush1.msra.mxu0 0.0
      %280 = vmatprep.subr.mxu0 0.0
      %281 = vmatpush1.msra.mxu0 0.0
      %282 = vmatprep.subr.mxu0 0.0
      %283 = vmatpush1.msra.mxu0 0.0
      %284 = vmatprep.subr.mxu0 0.0
      %285 = vmatpush1.msra.mxu0 0.0
      %286 = vmatprep.subr.mxu0 0.0
      %287 = vmatpush1.msra.mxu0 0.0
      %288 = vmatprep.subr.mxu0 0.0
      %289 = vmatpush1.msra.mxu0 0.0
      %290 = vmatprep.subr.mxu0 0.0
      %291 = vmatpush1.msra.mxu0 0.0
      %292 = vmatprep.subr.mxu0 0.0
      %293 = vmatpush1.msra.mxu0 0.0
      %294 = vmatprep.subr.mxu0 0.0
      %295 = vmatpush1.msra.mxu0 0.0
      %296 = vmatprep.subr.mxu0 0.0
      %297 = vmatpush1.msra.mxu0 0.0
      %298 = vmatprep.subr.mxu0 0.0
      %299 = vmatpush1.msra.mxu0 0.0
      %300 = vmatprep.subr.mxu0 0.0
      %301 = vmatpush1.msra.mxu0 0.0
      %302 = vmatprep.subr.mxu0 0.0
      %303 = vmatpush1.msra.mxu0 0.0
      %304 = vmatprep.subr.mxu0 0.0
      %305 = vmatpush1.msra.mxu0 0.0
      %306 = vmatprep.subr.mxu0 0.0
      %307 = vmatpush1.msra.mxu0 0.0
      %308 = vmatprep.subr.mxu0 0.0
      %309 = vmatpush1.msra.mxu0 0.0
      %310 = vmatprep.mubr.f32.mxu0 0.0
      %311 = vmatmul.mubr.f32.gmra.mrb[0].mxu0 %v244
      %v312 = vpop.f32.mrb[0].mxu0
      %v313 = vadd.f32 0.0, %v312
      %v314 = vpop.f32.mrb[0].mxu0
      %315 = vdwg.mxu0
      %v316 = vadd.f32 %v209, %v313
      %vm317 = vcmask 256000
      %318 = vst.msk [vmem:[#allocation2] sm:$0x7] %vm317, %v316
      %v319 = vld [vmem:[#allocation3] sm:$0x7]
      %320 = vmatprep.subr.mxu0 0.0
      %321 = vmatpush1.msra.mxu0 1.0
      %322 = vmatprep.subr.mxu0 0.0
      %323 = vmatpush1.msra.mxu0 0.0
      %324 = vmatprep.subr.mxu0 0.0
      %325 = vmatpush1.msra.mxu0 0.0
      %326 = vmatprep.subr.mxu0 0.0
      %327 = vmatpush1.msra.mxu0 0.0
      %328 = vmatprep.subr.mxu0 0.0
      %329 = vmatpush1.msra.mxu0 0.0
      %330 = vmatprep.subr.mxu0 0.0
      %331 = vmatpush1.msra.mxu0 0.0
      %332 = vmatprep.subr.mxu0 0.0
      %333 = vmatpush1.msra.mxu0 0.0
      %334 = vmatprep.subr.mxu0 0.0
      %335 = vmatpush1.msra.mxu0 0.0
      %336 = vmatprep.subr.mxu0 0.0
      %337 = vmatpush1.msra.mxu0 0.0
      %338 = vmatprep.subr.mxu0 0.0
      %339 = vmatpush1.msra.mxu0 0.0
      %340 = vmatprep.subr.mxu0 0.0
      %341 = vmatpush1.msra.mxu0 0.0
      %342 = vmatprep.subr.mxu0 0.0
      %343 = vmatpush1.msra.mxu0 0.0
      %344 = vmatprep.subr.mxu0 0.0
      %345 = vmatpush1.msra.mxu0 0.0
      %346 = vmatprep.subr.mxu0 0.0
      %347 = vmatpush1.msra.mxu0 0.0
      %348 = vmatprep.subr.mxu0 0.0
      %349 = vmatpush1.msra.mxu0 0.0
      %350 = vmatprep.subr.mxu0 0.0
      %351 = vmatpush1.msra.mxu0 0.0
      %352 = vmatprep.subr.mxu0 0.0
      %353 = vmatpush1.msra.mxu0 0.0
      %354 = vmatprep.subr.mxu0 0.0
      %355 = vmatpush1.msra.mxu0 0.0
      %356 = vmatprep.subr.mxu0 0.0
      %357 = vmatpush1.msra.mxu0 0.0
      %358 = vmatprep.subr.mxu0 0.0
      %359 = vmatpush1.msra.mxu0 0.0
      %360 = vmatprep.subr.mxu0 0.0
      %361 = vmatpush1.msra.mxu0 0.0
      %362 = vmatprep.subr.mxu0 0.0
      %363 = vmatpush1.msra.mxu0 0.0
      %364 = vmatprep.subr.mxu0 0.0
      %365 = vmatpush1.msra.mxu0 0.0
      %366 = vmatprep.subr.mxu0 0.0
      %367 = vmatpush1.msra.mxu0 0.0
      %368 = vmatprep.subr.mxu0 0.0
      %369 = vmatpush1.msra.mxu0 0.0
      %370 = vmatprep.subr.mxu0 0.0
      %371 = vmatpush1.msra.mxu0 0.0
      %372 = vmatprep.subr.mxu0 0.0
      %373 = vmatpush1.msra.mxu0 0.0
      %374 = vmatprep.subr.mxu0 0.0
      %375 = vmatpush1.msra.mxu0 0.0
      %376 = vmatprep.subr.mxu0 0.0
      %377 = vmatpush1.msra.mxu0 0.0
      %378 = vmatprep.subr.mxu0 0.0
      %379 = vmatpush1.msra.mxu0 0.0
      %380 = vmatprep.subr.mxu0 0.0
      %381 = vmatpush1.msra.mxu0 0.0
      %382 = vmatprep.subr.mxu0 0.0
      %383 = vmatpush1.msra.mxu0 0.0
      %384 = vmatprep.mubr.f32.mxu0 0.0
      %385 = vmatmul.mubr.f32.gmra.mrb[0].mxu0 %v244
      %v386 = vpop.f32.mrb[0].mxu0
      %v387 = vadd.f32 0.0, %v386
      %v388 = vpop.f32.mrb[0].mxu0
      %389 = vdwg.mxu0
      %v390 = vadd.f32 %v319, %v387
      %vm391 = vcmask 2048
      %392 = vst.msk [vmem:[#allocation3] sm:$0x7] %vm391, %v390
      // Predicated region
      $region33: #{tpu_custom_call.1} parent=27 // pred_check
        %p393 = pneg %p190
      $region34: #{tpu_custom_call.1} parent=27 // pred_check_branch
        %395 = sbr.rel (%p393) target = $region36
      $region35: #{tpu_custom_call.1} parent=27 // pred_region
        %v396 = vld [vmem:[#allocation3] sm:$0x7]
        %v397 = vadd.f32 %v396, 1e-07
        %v398 = vrcp.pop %v397
        %v399 = vmul.f32 1.0, %v398
        %v400 = vld [vmem:[#allocation2] sm:$0x7]
        %402 = vset.pattern.permute.xlu0 0
        %403 = vperm.xlu0 %402, %v399
        %v404 = vpop.permute.xlu0 %403
        %v406 = vmul.f32 %v400, %v404
        %407 = vst.msk [vmem:[%s189] sm:$0x7] %vm317, %v406
      $region36: #{tpu_custom_call.1} parent=27 // pred_fallthru
        _
      %p408 = scmp.lt.s32.totalorder %s17, 1
      %s409 = scalar_select %p408, %s17, 1
      %s410 = smul.addr %s409, 4
      %s411 = scalar_lea.vmem %s2, %s410
      // Predicated region
      $region37: #{tpu_custom_call.1} parent=27 // pred_check
        %p412 = pneg %p99
      $region38: #{tpu_custom_call.1} parent=27 // pred_check_branch
        %414 = sbr.rel (%p412) target = $region40
      $region39: #{tpu_custom_call.1} parent=27 // pred_region
        _
      $region40: #{tpu_custom_call.1} parent=27 // pred_fallthru
        _
    $region28: #{tpu_custom_call.1} parent=5 // pred_fallthru
      _
    %p415 = scmp.le.s32.totalorder 2, %s8
    // Predicated region
    $region41: #{tpu_custom_call.1} parent=5 // pred_check
      %p416 = pneg %p415
    $region42: #{tpu_custom_call.1} parent=5 // pred_check_branch
      %418 = sbr.rel (%p416) target = $region44
    $region43: #{tpu_custom_call.1} parent=5 // pred_region
      %s419 = ssub.s32 %s8, 2
      // Predicated region
      $region45: #{tpu_custom_call.1} parent=43 // pred_check
        %p420 = pneg %p105
      $region46: #{tpu_custom_call.1} parent=43 // pred_check_branch
        %422 = sbr.rel (%p420) target = $region48
      $region47: #{tpu_custom_call.1} parent=43 // pred_region
        %p423 = scmp.lt.s32.totalorder %s19, 1
        %s424 = scalar_select %p423, %s19, 1
        %s425 = smul.addr %s424, 4
        %s426 = scalar_lea.vmem %s2, %s425
      $region48: #{tpu_custom_call.1} parent=43 // pred_fallthru
        _
    $region44: #{tpu_custom_call.1} parent=5 // pred_fallthru
      _
  $region6: #{tpu_custom_call.1} parent=0 // loop_footer
    %s12 = sadd.s32 1, %s8
  $region7: #{tpu_custom_call.1} parent=0 // loop_footer_branch
    %7 = sbr.rel target = $region3
  $region8: #{tpu_custom_call.1} parent=0 // loop_exit
    _

</llo_original>
